<compile_context>
chip_gen: v7x
topology: tpu7x:2x2x1
jax: 0.10.0
libtpu: 0.0.40
codegen_flags: <defaults>
</compile_context>

<pallas_src>
import jax
import jax.numpy as jnp
from jax import lax
from jax.experimental import pallas as pl
from jax.experimental.pallas import tpu as pltpu


# ----------------------------------------------------------------------------
# Kernel
# ----------------------------------------------------------------------------
def _shift_kx(t, kx, mask_l, mask_r):
    """x[., w + kx - 1] with zeros outside [0, W): lane shift by +/-1 + mask.

    `t` is (Cin, S) with S = TH*W flat row-major spatial; the masks kill the
    positions that would otherwise wrap across an image row.
    """
    if kx == 1:
        return t
    if kx == 0:   # needs x[., w-1]; zero at w == 0
        shifted = jnp.concatenate([t[:, :1], t[:, :-1]], axis=1)
        return jnp.where(mask_l, shifted, 0.0)
    # kx == 2: needs x[., w+1]; zero at w == W-1
    shifted = jnp.concatenate([t[:, 1:], t[:, -1:]], axis=1)
    return jnp.where(mask_r, shifted, 0.0)


def _to_logits_kernel(xm_ref, top_ref, bot_ref, w1t_ref, scale_ref, bias_ref,
                      w2t_ref, b2_ref, out_ref, col_ref):
    """One (batch, row-tile) grid step of the to_logits head.

    xm_ref   : (1, Cin, S)     main row tile, flat spatial S = TH*W (lane dense)
    top_ref  : (1, 1, Cin, W)  row above the tile (clamped; zeroed at h == 0)
    bot_ref  : (1, 1, Cin, W)  row below the tile (clamped; zeroed at h == last)
    w1t_ref  : (Cmid, 9*Cin)   3x3 conv weights, transposed, (ky,kx,c)-major cols
    scale_ref, bias_ref : (Cmid, 1)   folded BatchNorm (inference)
    w2t_ref  : (Cout, Cmid)    1x1 conv weights, transposed
    b2_ref   : (Cout, 1)       1x1 conv bias
    out_ref  : (1, Cout, S)    NCHW-flat output tile (lane dense)
    col_ref  : (9*Cin, S)      im2col scratch (compute dtype), spatial on lanes
    """
    Cin = xm_ref.shape[1]
    S = xm_ref.shape[2]
    W = top_ref.shape[-1]
    cdt = col_ref.dtype
    h = pl.program_id(1)
    n_h = pl.num_programs(1)

    xf = xm_ref[0]                                        # (Cin, S) f32
    # Halo rows, zeroed when the tile touches the top/bottom of the image.
    top = top_ref[0, 0] * (h > 0).astype(xf.dtype)        # (Cin, W)
    bot = bot_ref[0, 0] * (h < n_h - 1).astype(xf.dtype)  # (Cin, W)

    # Row-shifted copies of the tile (x[h-1, w] / x[h+1, w]), built once.
    if S == W:                                            # degenerate TH == 1
        up, down = top, bot
    else:
        up = jnp.concatenate([top, xf[:, :S - W]], axis=1)
        down = jnp.concatenate([xf[:, W:], bot], axis=1)

    # Column masks for the kx = 0 / 2 taps (zero outside the image width).
    wpos = lax.broadcasted_iota(jnp.int32, (1, S), 1) % W
    mask_l = wpos != 0
    mask_r = wpos != (W - 1)

    # im2col: 9 lane-dense, lane-aligned stores into (9*Cin, S).
    rows = (up, xf, down)
    for ky in range(3):
        t = rows[ky]
        for kx in range(3):
            k = ky * 3 + kx
            col_ref[k * Cin:(k + 1) * Cin, :] = (
                _shift_kx(t, kx, mask_l, mask_r).astype(cdt))

    # Fused 3x3 conv: one MXU pass, K = 9*Cin, f32 accumulation.
    acc = jnp.dot(w1t_ref[...], col_ref[...],
                  preferred_element_type=jnp.float32)      # (Cmid, S)

    # Folded BatchNorm + ReLU, lane dense ((Cmid,1) broadcast over S lanes).
    hidden = jnp.maximum(acc * scale_ref[...] + bias_ref[...], 0.0)

    # 1x1 conv: (Cout, Cmid) @ (Cmid, S) -> (Cout, S); no relayout needed.
    y = jnp.dot(w2t_ref[...], hidden, preferred_element_type=jnp.float32)
    out_ref[0] = (y + b2_ref[...]).astype(out_ref.dtype)


# ----------------------------------------------------------------------------
# Tile-size / VMEM planning
# ----------------------------------------------------------------------------
def _vmem_plan():
    """(vmem_limit_bytes, working-set budget), adapted to the TPU generation."""
    try:
        info = pltpu.get_tpu_info()
        cap = int(getattr(info, "vmem_capacity_bytes", 64 * 1024 * 1024))
    except Exception:                       # no TPU info: assume the small VMEM
        cap = 64 * 1024 * 1024
    if cap <= 64 * 1024 * 1024:             # v7x-class TensorCore (64 MiB VMEM)
        limit = 40 * 1024 * 1024
    else:                                   # v5e / v6e (128 MiB VMEM)
        limit = 100 * 1024 * 1024
    return limit, int(limit * 0.75)


def _workset_bytes(TH, W, Cin, Cmid, Cout, cbytes):
    S = TH * W
    col = 9 * Cin * S * cbytes                    # im2col scratch
    io = 2 * Cin * S * 4 + 2 * Cout * S * 4       # double-buffered in/out tiles
    live = 2 * Cin * S * 4 + 2 * Cmid * S * 4     # up/down temps + acc/hidden
    wts = (9 * Cin * Cmid * cbytes
           + 4 * (Cout * Cmid + 2 * Cmid + Cout + 4 * Cin * W))
    return col + io + live + wts


def _pick_block_h(H, W, Cin, Cmid, Cout, cbytes, budget, min_tiles):
    """Largest row tile TH (dividing H) whose working set fits the VMEM budget,
    keeps the output lane-aligned ((TH*W) % 128 == 0, or TH == H), and leaves
    at least `min_tiles` row tiles so every TensorCore gets work."""
    divs = [d for d in range(H, 0, -1) if H % d == 0]
    legal = [d for d in divs if (d * W) % 128 == 0 or d == H]
    fits = [d for d in legal
            if _workset_bytes(d, W, Cin, Cmid, Cout, cbytes) <= budget]
    best = [d for d in fits if (H // d) >= min_tiles]
    if best:
        return best[0]
    if fits:
        return fits[0]
    if legal:
        return legal[-1]   # nothing fits the budget: smallest legal tile
    return H


# ----------------------------------------------------------------------------
# Host wrapper (to_logits head)
# ----------------------------------------------------------------------------
def to_logits_head(x_nchw, w1_hwio, bn_scale, bn_bias, w2, b2, *,
                   compute_dtype=jnp.float32, block_h=None):
    """conv3x3 (no bias) + folded BN + ReLU + conv1x1 via one Pallas kernel.

    Returns an NCHW-flat (N, Cout, H*W) float32 array.
    """
    N, Cin, H, W = x_nchw.shape
    Cmid = w1_hwio.shape[3]
    Cout = w2.shape[1]
    cbytes = jnp.dtype(compute_dtype).itemsize

    vmem_limit, budget = _vmem_plan()
    min_tiles = 1 if N >= 2 else 2          # keep >= 2 grid steps (v7x megacore)
    TH = block_h if block_h is not None else _pick_block_h(
        H, W, Cin, Cmid, Cout, cbytes, budget, min_tiles)
    assert H % TH == 0, "row tile must divide H"
    assert (TH * W) % 128 == 0 or TH == H, "row tile must keep lane alignment"
    nT = H // TH
    S = TH * W

    # Free reshape only -- no transpose / pad of the feature map.
    x_flat = x_nchw.reshape(N, Cin, H * W)
    # Tiny halo gather: first & last row of every row tile (2/TH of the input).
    xt = x_nchw.reshape(N, Cin, nT, TH, W)
    halo = jnp.stack([xt[:, :, :, 0, :], xt[:, :, :, TH - 1, :]], axis=3)
    halo = jnp.transpose(halo, (0, 2, 3, 1, 4)).reshape(N * nT, 2, Cin, W)

    w1t = jnp.transpose(w1_hwio.reshape(9 * Cin, Cmid)).astype(compute_dtype)
    scale = bn_scale.reshape(Cmid, 1).astype(jnp.float32)
    bias = bn_bias.reshape(Cmid, 1).astype(jnp.float32)
    w2t = jnp.transpose(w2).astype(jnp.float32)
    b2c = b2.reshape(Cout, 1).astype(jnp.float32)

    flops = 2 * N * H * W * (9 * Cin * Cmid + Cmid * Cout)
    bytes_accessed = (4 * x_flat.size            # main input stream
                      + 2 * 4 * halo.size        # halo rows, re-read per tile
                      + cbytes * w1t.size
                      + 4 * (scale.size + bias.size + w2t.size + b2c.size)
                      + 4 * N * Cout * H * W)    # output

    grid = (N, nT)
    kernel = pl.pallas_call(
        _to_logits_kernel,
        out_shape=jax.ShapeDtypeStruct((N, Cout, H * W), jnp.float32),
        grid_spec=pltpu.PrefetchScalarGridSpec(
            num_scalar_prefetch=0,
            grid=grid,
            in_specs=[
                # main row tile, flat spatial (lane dense)
                pl.BlockSpec((1, Cin, S), lambda b, h: (b, 0, h)),
                # row above (last row of tile h-1), clamped at the image edge
                pl.BlockSpec((1, 1, Cin, W),
                             lambda b, h: (b * nT + jnp.maximum(h - 1, 0),
                                           1, 0, 0)),
                # row below (first row of tile h+1), clamped at the image edge
                pl.BlockSpec((1, 1, Cin, W),
                             lambda b, h: (b * nT + jnp.minimum(h + 1, nT - 1),
                                           0, 0, 0)),
                pl.BlockSpec((Cmid, 9 * Cin), lambda b, h: (0, 0)),
                pl.BlockSpec((Cmid, 1), lambda b, h: (0, 0)),
                pl.BlockSpec((Cmid, 1), lambda b, h: (0, 0)),
                pl.BlockSpec((Cout, Cmid), lambda b, h: (0, 0)),
                pl.BlockSpec((Cout, 1), lambda b, h: (0, 0)),
            ],
            out_specs=pl.BlockSpec((1, Cout, S), lambda b, h: (b, 0, h)),
            scratch_shapes=[pltpu.VMEM((9 * Cin, S), compute_dtype)],
        ),
        compiler_params=pltpu.CompilerParams(
            dimension_semantics=("parallel", "parallel"),
            vmem_limit_bytes=vmem_limit),
        cost_estimate=pl.CostEstimate(flops=flops, transcendentals=0,
                                      bytes_accessed=bytes_accessed),
    )
    return kernel(x_flat, halo, halo, w1t, scale, bias, w2t, b2c)


def cross_view_transformer_forward(batch_nchw, params, outputs, *,
                                   compute_dtype=jnp.float32, block_h=None):
    """Mirrors CrossViewTransformer.forward: encoder, then per-output slicing.

    TODO(synk): the real `encoder` / `decoder` are injected black-box modules;
    only the concrete `to_logits` head defined by the module is implemented.
    """
    N, _, H, W = batch_nchw.shape
    Cout = params["w2"].shape[1]
    z_flat = to_logits_head(batch_nchw, params["w1"], params["bn_scale"],
                            params["bn_bias"], params["w2"], params["b2"],
                            compute_dtype=compute_dtype, block_h=block_h)
    z = z_flat.reshape(N, Cout, H, W)       # free: already channels-first
    return {k: z[:, start:stop] for k, (start, stop) in outputs.items()}


# ----------------------------------------------------------------------------
# Pure-JAX reference
# ----------------------------------------------------------------------------
def _reference_forward(batch_nchw, params, outputs):
    h = lax.conv_general_dilated(
        batch_nchw, params["w1"], window_strides=(1, 1), padding="SAME",
        dimension_numbers=("NCHW", "HWIO", "NCHW"))
    h = jnp.maximum(h * params["bn_scale"].reshape(1, -1, 1, 1)
                    + params["bn_bias"].reshape(1, -1, 1, 1), 0.0)
    y = (jnp.einsum("nchw,cd->ndhw", h, params["w2"])
         + params["b2"].reshape(1, -1, 1, 1))
    return {k: y[:, start:stop] for k, (start, stop) in outputs.items()}


# ----------------------------------------------------------------------------
# Demo / self-check
# ----------------------------------------------------------------------------
if __name__ == "__main__":
    N, Cin, H, W = 2, 4, 16, 16
    dim_last = 32
    outputs = {"bev": [0, 4], "center": [4, 8]}

    # Same asserts as the module __init__.
    dim_total, dim_max = 0, 0
    for _, (start, stop) in outputs.items():
        assert start < stop
        dim_total += stop - start
        dim_max = max(dim_max, stop)
    assert dim_max == dim_total

    key = jax.random.PRNGKey(0)
    k_x, k_w1, k_g, k_b, k_m, k_v, k_w2, k_b2 = jax.random.split(key, 8)
    batch = jax.random.normal(k_x, (N, Cin, H, W), jnp.float32)

    # Deterministic synthetic parameters (BatchNorm folded for inference).
    eps = 1e-5
    gamma = 1.0 + 0.1 * jax.random.normal(k_g, (dim_last,), jnp.float32)
    beta = 0.1 * jax.random.normal(k_b, (dim_last,), jnp.float32)
    running_mean = 0.1 * jax.random.normal(k_m, (dim_last,), jnp.float32)
    running_var = jnp.abs(jax.random.normal(k_v, (dim_last,), jnp.float32)) + 0.5
    bn_scale = gamma / jnp.sqrt(running_var + eps)
    bn_bias = beta - running_mean * bn_scale

    params = {
        "w1": 0.1 * jax.random.normal(k_w1, (3, 3, Cin, dim_last), jnp.float32),
        "bn_scale": bn_scale,
        "bn_bias": bn_bias,
        "w2": 0.1 * jax.random.normal(k_w2, (dim_last, dim_max), jnp.float32),
        "b2": 0.01 * jax.random.normal(k_b2, (dim_max,), jnp.float32),
    }

    ref = _reference_forward(batch, params, outputs)

    # 1) auto tile size (largest fit), f32 compute
    out_auto = cross_view_transformer_forward(batch, params, outputs)
    # 2) forced smaller row tile (exercises the cross-tile halo path), f32
    out_tiled = cross_view_transformer_forward(batch, params, outputs, block_h=8)
    # 3) bf16 matmul operands (fast MXU path on v6e/v7x), f32 accumulation
    out_bf16 = cross_view_transformer_forward(batch, params, outputs,
                                              block_h=8,
                                              compute_dtype=jnp.bfloat16)
    for d in (out_auto, out_tiled, out_bf16):
        for v in d.values():
            jax.block_until_ready(v)

    for name in outputs:
        assert out_auto[name].shape == ref[name].shape, name
        assert jnp.allclose(out_auto[name], ref[name],
                            rtol=1e-4, atol=1e-4), name
        assert jnp.allclose(out_tiled[name], ref[name],
                            rtol=1e-4, atol=1e-4), name
        assert jnp.allclose(out_bf16[name], ref[name],
                            rtol=2e-2, atol=2e-2), name

    print("KERNEL_OK")
</pallas_src>

<mosaic_0001>
module attributes {stable_mosaic.version = 11 : i64} {
  func.func @_to_logits_kernel(%arg0: i32, %arg1: i32, %arg2: memref<1x4x256xf32, #tpu.memory_space<vmem>>, %arg3: memref<1x1x4x16xf32, #tpu.memory_space<vmem>>, %arg4: memref<1x1x4x16xf32, #tpu.memory_space<vmem>>, %arg5: memref<32x36xf32, #tpu.memory_space<vmem>>, %arg6: memref<32x1xf32, #tpu.memory_space<vmem>>, %arg7: memref<32x1xf32, #tpu.memory_space<vmem>>, %arg8: memref<8x32xf32, #tpu.memory_space<vmem>>, %arg9: memref<8x1xf32, #tpu.memory_space<vmem>>, %arg10: memref<1x8x256xf32, #tpu.memory_space<vmem>>, %arg11: memref<36x256xf32, #tpu.memory_space<vmem>>) attributes {dimension_semantics = [#tpu.dimension_semantics<parallel>, #tpu.dimension_semantics<parallel>], iteration_bounds = array<i64: 2, 1>, scalar_prefetch = 0 : i64, scratch_operands = 1 : i64, tpu.core_type = #tpu.core_type<tc>, window_params = [{transform_indices = @transform_0, window_bounds = array<i64: 1, 4, 256>}, {transform_indices = @transform_1, window_bounds = array<i64: 1, 1, 4, 16>}, {transform_indices = @transform_2, window_bounds = array<i64: 1, 1, 4, 16>}, {pipeline_mode = #tpu.pipeline_mode<synchronous>, transform_indices = @transform_3, window_bounds = array<i64: 32, 36>}, {pipeline_mode = #tpu.pipeline_mode<synchronous>, transform_indices = @transform_4, window_bounds = array<i64: 32, 1>}, {pipeline_mode = #tpu.pipeline_mode<synchronous>, transform_indices = @transform_5, window_bounds = array<i64: 32, 1>}, {pipeline_mode = #tpu.pipeline_mode<synchronous>, transform_indices = @transform_6, window_bounds = array<i64: 8, 32>}, {pipeline_mode = #tpu.pipeline_mode<synchronous>, transform_indices = @transform_7, window_bounds = array<i64: 8, 1>}, {transform_indices = @transform_8, window_bounds = array<i64: 1, 8, 256>}]} {
    %c0 = arith.constant 0 : index
    %c0_0 = arith.constant 0 : index
    %c0_1 = arith.constant 0 : index
    %0 = vector.load %arg2[%c0, %c0_0, %c0_1] : memref<1x4x256xf32, #tpu.memory_space<vmem>>, vector<1x4x256xf32>
    %1 = vector.shape_cast %0 : vector<1x4x256xf32> to vector<4x256xf32>
    %c0_2 = arith.constant 0 : index
    %c0_3 = arith.constant 0 : index
    %c0_4 = arith.constant 0 : index
    %c0_5 = arith.constant 0 : index
    %2 = vector.load %arg3[%c0_2, %c0_3, %c0_4, %c0_5] : memref<1x1x4x16xf32, #tpu.memory_space<vmem>>, vector<1x1x4x16xf32>
    %3 = vector.shape_cast %2 : vector<1x1x4x16xf32> to vector<4x16xf32>
    %c0_i32 = arith.constant 0 : i32
    %4 = arith.cmpi sgt, %arg1, %c0_i32 : i32
    %5 = arith.extui %4 : i1 to i32
    %6 = arith.sitofp %5 : i32 to f32
    %7 = vector.broadcast %6 : f32 to vector<4x16xf32>
    %8 = arith.mulf %3, %7 : vector<4x16xf32>
    %c0_6 = arith.constant 0 : index
    %c0_7 = arith.constant 0 : index
    %c0_8 = arith.constant 0 : index
    %c0_9 = arith.constant 0 : index
    %9 = vector.load %arg4[%c0_6, %c0_7, %c0_8, %c0_9] : memref<1x1x4x16xf32, #tpu.memory_space<vmem>>, vector<1x1x4x16xf32>
    %10 = vector.shape_cast %9 : vector<1x1x4x16xf32> to vector<4x16xf32>
    %c0_i32_10 = arith.constant 0 : i32
    %11 = arith.cmpi slt, %arg1, %c0_i32_10 : i32
    %12 = arith.extui %11 : i1 to i32
    %13 = arith.sitofp %12 : i32 to f32
    %14 = vector.broadcast %13 : f32 to vector<4x16xf32>
    %15 = arith.mulf %10, %14 : vector<4x16xf32>
    %16 = vector.extract_strided_slice %1 {offsets = [0, 0], sizes = [4, 240], strides = [1, 1]} : vector<4x256xf32> to vector<4x240xf32>
    %17 = tpu.concatenate %8, %16 in 1 : vector<4x16xf32>, vector<4x240xf32> -> vector<4x256xf32>
    %18 = vector.extract_strided_slice %1 {offsets = [0, 16], sizes = [4, 240], strides = [1, 1]} : vector<4x256xf32> to vector<4x240xf32>
    %19 = tpu.concatenate %18, %15 in 1 : vector<4x240xf32>, vector<4x16xf32> -> vector<4x256xf32>
    %20 = tpu.iota {dimensions = array<i32: 1>} : vector<1x256xi32>
    %c16_i32 = arith.constant 16 : i32
    %c0_i32_11 = arith.constant 0 : i32
    %21 = arith.cmpi eq, %c16_i32, %c0_i32_11 : i32
    %c1_i32 = arith.constant 1 : i32
    %22 = arith.select %21, %c1_i32, %c16_i32 : i32
    %23 = vector.broadcast %22 : i32 to vector<1x256xi32>
    %24 = arith.remsi %20, %23 : vector<1x256xi32>
    %c0_i32_12 = arith.constant 0 : i32
    %25 = vector.broadcast %c0_i32_12 : i32 to vector<1x256xi32>
    %26 = arith.cmpi ne, %24, %25 : vector<1x256xi32>
    %c0_i32_13 = arith.constant 0 : i32
    %27 = vector.broadcast %c0_i32_13 : i32 to vector<1x256xi32>
    %28 = arith.cmpi slt, %24, %27 : vector<1x256xi32>
    %c0_i32_14 = arith.constant 0 : i32
    %29 = arith.cmpi slt, %22, %c0_i32_14 : i32
    %30 = vector.broadcast %29 : i1 to vector<1x256xi1>
    %31 = vector.broadcast %30 : vector<1x256xi1> to vector<1x256xi1>
    %32 = arith.xori %28, %31 : vector<1x256xi1>
    %33 = arith.andi %32, %26 : vector<1x256xi1>
    %34 = vector.broadcast %22 : i32 to vector<1x256xi32>
    %35 = arith.addi %24, %34 : vector<1x256xi32>
    %36 = arith.select %33, %35, %24 : vector<1x256xi1>, vector<1x256xi32>
    %c0_i32_15 = arith.constant 0 : i32
    %37 = vector.broadcast %c0_i32_15 : i32 to vector<1x256xi32>
    %38 = arith.cmpi ne, %36, %37 : vector<1x256xi32>
    %c15_i32 = arith.constant 15 : i32
    %39 = vector.broadcast %c15_i32 : i32 to vector<1x256xi32>
    %40 = arith.cmpi ne, %36, %39 : vector<1x256xi32>
    %41 = vector.extract_strided_slice %17 {offsets = [0, 0], sizes = [4, 1], strides = [1, 1]} : vector<4x256xf32> to vector<4x1xf32>
    %42 = vector.extract_strided_slice %17 {offsets = [0, 0], sizes = [4, 255], strides = [1, 1]} : vector<4x256xf32> to vector<4x255xf32>
    %43 = tpu.concatenate %41, %42 in 1 : vector<4x1xf32>, vector<4x255xf32> -> vector<4x256xf32>
    %cst = arith.constant 0.000000e+00 : f32
    %44 = vector.shape_cast %38 : vector<1x256xi1> to vector<1x256xi1>
    %45 = vector.broadcast %44 : vector<1x256xi1> to vector<4x256xi1>
    %46 = vector.broadcast %cst : f32 to vector<4x256xf32>
    %47 = arith.select %45, %43, %46 : vector<4x256xi1>, vector<4x256xf32>
    %c0_16 = arith.constant 0 : index
    %c0_17 = arith.constant 0 : index
    %48 = vector.load %arg11[%c0_16, %c0_17] : memref<36x256xf32, #tpu.memory_space<vmem>>, vector<4x256xf32>
    tpu.vector_store %arg11[%c0_16, %c0_17], %47 {strides = array<i32>} : memref<36x256xf32, #tpu.memory_space<vmem>>, vector<4x256xf32>,
    %c4 = arith.constant 4 : index
    %c0_18 = arith.constant 0 : index
    %49 = vector.load %arg11[%c4, %c0_18] : memref<36x256xf32, #tpu.memory_space<vmem>>, vector<4x256xf32>
    tpu.vector_store %arg11[%c4, %c0_18], %17 {strides = array<i32>} : memref<36x256xf32, #tpu.memory_space<vmem>>, vector<4x256xf32>,
    %50 = vector.extract_strided_slice %17 {offsets = [0, 1], sizes = [4, 255], strides = [1, 1]} : vector<4x256xf32> to vector<4x255xf32>
    %51 = vector.extract_strided_slice %17 {offsets = [0, 255], sizes = [4, 1], strides = [1, 1]} : vector<4x256xf32> to vector<4x1xf32>
    %52 = tpu.concatenate %50, %51 in 1 : vector<4x255xf32>, vector<4x1xf32> -> vector<4x256xf32>
    %cst_19 = arith.constant 0.000000e+00 : f32
    %53 = vector.shape_cast %40 : vector<1x256xi1> to vector<1x256xi1>
    %54 = vector.broadcast %53 : vector<1x256xi1> to vector<4x256xi1>
    %55 = vector.broadcast %cst_19 : f32 to vector<4x256xf32>
    %56 = arith.select %54, %52, %55 : vector<4x256xi1>, vector<4x256xf32>
    %c8 = arith.constant 8 : index
    %c0_20 = arith.constant 0 : index
    %57 = vector.load %arg11[%c8, %c0_20] : memref<36x256xf32, #tpu.memory_space<vmem>>, vector<4x256xf32>
    tpu.vector_store %arg11[%c8, %c0_20], %56 {strides = array<i32>} : memref<36x256xf32, #tpu.memory_space<vmem>>, vector<4x256xf32>,
    %58 = vector.extract_strided_slice %1 {offsets = [0, 0], sizes = [4, 1], strides = [1, 1]} : vector<4x256xf32> to vector<4x1xf32>
    %59 = vector.extract_strided_slice %1 {offsets = [0, 0], sizes = [4, 255], strides = [1, 1]} : vector<4x256xf32> to vector<4x255xf32>
    %60 = tpu.concatenate %58, %59 in 1 : vector<4x1xf32>, vector<4x255xf32> -> vector<4x256xf32>
    %cst_21 = arith.constant 0.000000e+00 : f32
    %61 = vector.shape_cast %38 : vector<1x256xi1> to vector<1x256xi1>
    %62 = vector.broadcast %61 : vector<1x256xi1> to vector<4x256xi1>
    %63 = vector.broadcast %cst_21 : f32 to vector<4x256xf32>
    %64 = arith.select %62, %60, %63 : vector<4x256xi1>, vector<4x256xf32>
    %c12 = arith.constant 12 : index
    %c0_22 = arith.constant 0 : index
    %65 = vector.load %arg11[%c12, %c0_22] : memref<36x256xf32, #tpu.memory_space<vmem>>, vector<4x256xf32>
    tpu.vector_store %arg11[%c12, %c0_22], %64 {strides = array<i32>} : memref<36x256xf32, #tpu.memory_space<vmem>>, vector<4x256xf32>,
    %c16 = arith.constant 16 : index
    %c0_23 = arith.constant 0 : index
    %66 = vector.load %arg11[%c16, %c0_23] : memref<36x256xf32, #tpu.memory_space<vmem>>, vector<4x256xf32>
    tpu.vector_store %arg11[%c16, %c0_23], %1 {strides = array<i32>} : memref<36x256xf32, #tpu.memory_space<vmem>>, vector<4x256xf32>,
    %67 = vector.extract_strided_slice %1 {offsets = [0, 1], sizes = [4, 255], strides = [1, 1]} : vector<4x256xf32> to vector<4x255xf32>
    %68 = vector.extract_strided_slice %1 {offsets = [0, 255], sizes = [4, 1], strides = [1, 1]} : vector<4x256xf32> to vector<4x1xf32>
    %69 = tpu.concatenate %67, %68 in 1 : vector<4x255xf32>, vector<4x1xf32> -> vector<4x256xf32>
    %cst_24 = arith.constant 0.000000e+00 : f32
    %70 = vector.shape_cast %40 : vector<1x256xi1> to vector<1x256xi1>
    %71 = vector.broadcast %70 : vector<1x256xi1> to vector<4x256xi1>
    %72 = vector.broadcast %cst_24 : f32 to vector<4x256xf32>
    %73 = arith.select %71, %69, %72 : vector<4x256xi1>, vector<4x256xf32>
    %c20 = arith.constant 20 : index
    %c0_25 = arith.constant 0 : index
    %74 = vector.load %arg11[%c20, %c0_25] : memref<36x256xf32, #tpu.memory_space<vmem>>, vector<4x256xf32>
    tpu.vector_store %arg11[%c20, %c0_25], %73 {strides = array<i32>} : memref<36x256xf32, #tpu.memory_space<vmem>>, vector<4x256xf32>,
    %75 = vector.extract_strided_slice %19 {offsets = [0, 0], sizes = [4, 1], strides = [1, 1]} : vector<4x256xf32> to vector<4x1xf32>
    %76 = vector.extract_strided_slice %19 {offsets = [0, 0], sizes = [4, 255], strides = [1, 1]} : vector<4x256xf32> to vector<4x255xf32>
    %77 = tpu.concatenate %75, %76 in 1 : vector<4x1xf32>, vector<4x255xf32> -> vector<4x256xf32>
    %cst_26 = arith.constant 0.000000e+00 : f32
    %78 = vector.shape_cast %38 : vector<1x256xi1> to vector<1x256xi1>
    %79 = vector.broadcast %78 : vector<1x256xi1> to vector<4x256xi1>
    %80 = vector.broadcast %cst_26 : f32 to vector<4x256xf32>
    %81 = arith.select %79, %77, %80 : vector<4x256xi1>, vector<4x256xf32>
    %c24 = arith.constant 24 : index
    %c0_27 = arith.constant 0 : index
    %82 = vector.load %arg11[%c24, %c0_27] : memref<36x256xf32, #tpu.memory_space<vmem>>, vector<4x256xf32>
    tpu.vector_store %arg11[%c24, %c0_27], %81 {strides = array<i32>} : memref<36x256xf32, #tpu.memory_space<vmem>>, vector<4x256xf32>,
    %c28 = arith.constant 28 : index
    %c0_28 = arith.constant 0 : index
    %83 = vector.load %arg11[%c28, %c0_28] : memref<36x256xf32, #tpu.memory_space<vmem>>, vector<4x256xf32>
    tpu.vector_store %arg11[%c28, %c0_28], %19 {strides = array<i32>} : memref<36x256xf32, #tpu.memory_space<vmem>>, vector<4x256xf32>,
    %84 = vector.extract_strided_slice %19 {offsets = [0, 1], sizes = [4, 255], strides = [1, 1]} : vector<4x256xf32> to vector<4x255xf32>
    %85 = vector.extract_strided_slice %19 {offsets = [0, 255], sizes = [4, 1], strides = [1, 1]} : vector<4x256xf32> to vector<4x1xf32>
    %86 = tpu.concatenate %84, %85 in 1 : vector<4x255xf32>, vector<4x1xf32> -> vector<4x256xf32>
    %cst_29 = arith.constant 0.000000e+00 : f32
    %87 = vector.shape_cast %40 : vector<1x256xi1> to vector<1x256xi1>
    %88 = vector.broadcast %87 : vector<1x256xi1> to vector<4x256xi1>
    %89 = vector.broadcast %cst_29 : f32 to vector<4x256xf32>
    %90 = arith.select %88, %86, %89 : vector<4x256xi1>, vector<4x256xf32>
    %c32 = arith.constant 32 : index
    %c0_30 = arith.constant 0 : index
    %91 = vector.load %arg11[%c32, %c0_30] : memref<36x256xf32, #tpu.memory_space<vmem>>, vector<4x256xf32>
    tpu.vector_store %arg11[%c32, %c0_30], %90 {strides = array<i32>} : memref<36x256xf32, #tpu.memory_space<vmem>>, vector<4x256xf32>,
    %c0_31 = arith.constant 0 : index
    %c0_32 = arith.constant 0 : index
    %92 = vector.load %arg5[%c0_31, %c0_32] : memref<32x36xf32, #tpu.memory_space<vmem>>, vector<32x36xf32>
    %c0_33 = arith.constant 0 : index
    %c0_34 = arith.constant 0 : index
    %93 = vector.load %arg11[%c0_33, %c0_34] : memref<36x256xf32, #tpu.memory_space<vmem>>, vector<36x256xf32>
    %cst_35 = arith.constant dense<0.000000e+00> : vector<32x256xf32>
    %94 = tpu.matmul %92, %93, %cst_35 {dimension_numbers = #tpu.dot_dimension_numbers<[1], [0], [0], [1], [0, 0, 1, 1], [], []>} : vector<32x36xf32>, vector<36x256xf32>, vector<32x256xf32> -> vector<32x256xf32>
    %c0_36 = arith.constant 0 : index
    %c0_37 = arith.constant 0 : index
    %95 = vector.load %arg6[%c0_36, %c0_37] : memref<32x1xf32, #tpu.memory_space<vmem>>, vector<32x1xf32>
    %96 = vector.broadcast %95 : vector<32x1xf32> to vector<32x256xf32>
    %97 = arith.mulf %94, %96 : vector<32x256xf32>
    %c0_38 = arith.constant 0 : index
    %c0_39 = arith.constant 0 : index
    %98 = vector.load %arg7[%c0_38, %c0_39] : memref<32x1xf32, #tpu.memory_space<vmem>>, vector<32x1xf32>
    %99 = vector.broadcast %98 : vector<32x1xf32> to vector<32x256xf32>
    %100 = arith.addf %97, %99 : vector<32x256xf32>
    %cst_40 = arith.constant 0.000000e+00 : f32
    %101 = vector.broadcast %cst_40 : f32 to vector<32x256xf32>
    %102 = arith.maximumf %100, %101 : vector<32x256xf32>
    %c0_41 = arith.constant 0 : index
    %c0_42 = arith.constant 0 : index
    %103 = vector.load %arg8[%c0_41, %c0_42] : memref<8x32xf32, #tpu.memory_space<vmem>>, vector<8x32xf32>
    %cst_43 = arith.constant dense<0.000000e+00> : vector<8x256xf32>
    %104 = tpu.matmul %103, %102, %cst_43 {dimension_numbers = #tpu.dot_dimension_numbers<[1], [0], [0], [1], [0, 0, 1, 1], [], []>} : vector<8x32xf32>, vector<32x256xf32>, vector<8x256xf32> -> vector<8x256xf32>
    %c0_44 = arith.constant 0 : index
    %c0_45 = arith.constant 0 : index
    %105 = vector.load %arg9[%c0_44, %c0_45] : memref<8x1xf32, #tpu.memory_space<vmem>>, vector<8x1xf32>
    %106 = vector.broadcast %105 : vector<8x1xf32> to vector<8x256xf32>
    %107 = arith.addf %104, %106 : vector<8x256xf32>
    %c0_46 = arith.constant 0 : index
    %c0_47 = arith.constant 0 : index
    %c0_48 = arith.constant 0 : index
    %108 = vector.load %arg10[%c0_46, %c0_47, %c0_48] : memref<1x8x256xf32, #tpu.memory_space<vmem>>, vector<1x8x256xf32>
    %109 = vector.shape_cast %108 : vector<1x8x256xf32> to vector<8x256xf32>
    %110 = vector.shape_cast %107 : vector<8x256xf32> to vector<1x8x256xf32>
    tpu.vector_store %arg10[%c0_46, %c0_47, %c0_48], %110 {strides = array<i32>} : memref<1x8x256xf32, #tpu.memory_space<vmem>>, vector<1x8x256xf32>,
    return
  }
  func.func @transform_0(%arg0: i32, %arg1: i32) -> (i32, i32, i32) {
    %c0_i32 = arith.constant 0 : i32
    %c0_i32_0 = arith.constant 0 : i32
    return %arg0, %c0_i32, %arg1 : i32, i32, i32
  }
  func.func @transform_1(%arg0: i32, %arg1: i32) -> (i32, i32, i32, i32) {
    %c1_i32 = arith.constant 1 : i32
    %0 = arith.muli %arg0, %c1_i32 : i32
    %c1_i32_0 = arith.constant 1 : i32
    %1 = arith.subi %arg1, %c1_i32_0 : i32
    %c0_i32 = arith.constant 0 : i32
    %2 = arith.maxsi %1, %c0_i32 : i32
    %3 = arith.addi %0, %2 : i32
    %c1_i32_1 = arith.constant 1 : i32
    %c0_i32_2 = arith.constant 0 : i32
    %c0_i32_3 = arith.constant 0 : i32
    %c0_i32_4 = arith.constant 0 : i32
    return %3, %c1_i32_1, %c0_i32_2, %c0_i32_3 : i32, i32, i32, i32
  }
  func.func @transform_2(%arg0: i32, %arg1: i32) -> (i32, i32, i32, i32) {
    %c1_i32 = arith.constant 1 : i32
    %0 = arith.muli %arg0, %c1_i32 : i32
    %c1_i32_0 = arith.constant 1 : i32
    %1 = arith.addi %arg1, %c1_i32_0 : i32
    %c0_i32 = arith.constant 0 : i32
    %2 = arith.minsi %1, %c0_i32 : i32
    %3 = arith.addi %0, %2 : i32
    %c0_i32_1 = arith.constant 0 : i32
    %c0_i32_2 = arith.constant 0 : i32
    %c0_i32_3 = arith.constant 0 : i32
    %c0_i32_4 = arith.constant 0 : i32
    return %3, %c0_i32_1, %c0_i32_2, %c0_i32_3 : i32, i32, i32, i32
  }
  func.func @transform_3(%arg0: i32, %arg1: i32) -> (i32, i32) {
    %c0_i32 = arith.constant 0 : i32
    %c0_i32_0 = arith.constant 0 : i32
    %c0_i32_1 = arith.constant 0 : i32
    return %c0_i32, %c0_i32_0 : i32, i32
  }
  func.func @transform_4(%arg0: i32, %arg1: i32) -> (i32, i32) {
    %c0_i32 = arith.constant 0 : i32
    %c0_i32_0 = arith.constant 0 : i32
    %c0_i32_1 = arith.constant 0 : i32
    return %c0_i32, %c0_i32_0 : i32, i32
  }
  func.func @transform_5(%arg0: i32, %arg1: i32) -> (i32, i32) {
    %c0_i32 = arith.constant 0 : i32
    %c0_i32_0 = arith.constant 0 : i32
    %c0_i32_1 = arith.constant 0 : i32
    return %c0_i32, %c0_i32_0 : i32, i32
  }
  func.func @transform_6(%arg0: i32, %arg1: i32) -> (i32, i32) {
    %c0_i32 = arith.constant 0 : i32
    %c0_i32_0 = arith.constant 0 : i32
    %c0_i32_1 = arith.constant 0 : i32
    return %c0_i32, %c0_i32_0 : i32, i32
  }
  func.func @transform_7(%arg0: i32, %arg1: i32) -> (i32, i32) {
    %c0_i32 = arith.constant 0 : i32
    %c0_i32_0 = arith.constant 0 : i32
    %c0_i32_1 = arith.constant 0 : i32
    return %c0_i32, %c0_i32_0 : i32, i32
  }
  func.func @transform_8(%arg0: i32, %arg1: i32) -> (i32, i32, i32) {
    %c0_i32 = arith.constant 0 : i32
    %c0_i32_0 = arith.constant 0 : i32
    return %arg0, %c0_i32, %arg1 : i32, i32, i32
  }
}

</mosaic_0001>

<llo_original>
// kernel: tpu_custom_call.1
$region0: #{tpu_custom_call.1}
  #allocation0 [shape = 'u32[]', space=smem, size = 0x4, offset = 0x4, fixed_abs, tag = 'smem constant byte address 0x4 - core index']
  #allocation1 [shape = 'u32[144,128]{1,0:T(1,128)}', space=vmem, size = 0x12000, scoped, tag = 'internal scratch']
  #allocation2 [shape = 'f32[36,256]{1,0:T(8,128)}', space=vmem, size = 0xa000, scoped, tag = 'scratch operand']
  %s0 = inlined_call_operand.vmem [shape: f32[2,4,256], index: 0, kind: input, shape index: {}]
  %s1 = inlined_call_operand.vmem [shape: f32[2,2,4,16], index: 1, kind: input, shape index: {}]
  %s2 = inlined_call_operand.vmem [shape: f32[2,2,4,16], index: 2, kind: input, shape index: {}]
  %s3 = inlined_call_operand.vmem [shape: f32[32,36], index: 3, kind: input, shape index: {}]
  %s4 = inlined_call_operand.vmem [shape: f32[32,1], index: 4, kind: input, shape index: {}]
  %s5 = inlined_call_operand.vmem [shape: f32[32,1], index: 5, kind: input, shape index: {}]
  %s6 = inlined_call_operand.vmem [shape: f32[8,32], index: 6, kind: input, shape index: {}]
  %s7 = inlined_call_operand.vmem [shape: f32[8,1], index: 7, kind: input, shape index: {}]
  %s8 = inlined_call_operand.hbm [shape: f32[2,8,256], index: 8, kind: output, shape index: {}]
  %s9 = sld [smem:[#allocation0]]
  $region65: #{tpu_custom_call.1} parent=0
    _
  %s11 = ssub.s32 1, %s9
  %s12 = scalar_select 0, %s11, %s9
  $region1: #{tpu_custom_call.1} parent=0
    #allocation3 [shape = 'u8[16384]{0}', space=vmem, size = 0x4000, scoped, tag = 'output window, operand 0']
    #allocation4 [shape = 's32[2]{0}', space=sflag, size = 0x8, scoped, tag = 'scoped memory for tpu_custom_call.1']
    %13 = vsyncpa [#allocation4], 0
    %s14 = scalar_lea.sflag [#allocation4], 1
    %15 = vsyncpa %s14, 0
    loop: start=0, step=1, limit=4
    $region2: #{tpu_custom_call.1} parent=1 // loop_pre_header
      _
    $region3: #{tpu_custom_call.1} parent=1 // loop_header
      %s17 = sphi 0, %s21
      %p18 = scmp.ge.s32.totalorder %s17, 4
      %s24 = sphi 0, %s36
      %s25 = sphi 0, %s32
      %s26 = sphi 0, %s24
      %s27 = sphi 0, %s25
      %s28 = sphi 0, %s26
      %s29 = sphi 0, %s27
      %s41 = sphi 0, %s43
      %s44 = sphi 0, %s41
      %s45 = sphi 0, %s44
      %s61 = sphi 0, %s45
      %s75 = sphi 0, %s77
      %s78 = sphi 0, %s75
      %s79 = sphi 0, %s78
      %s95 = sphi 0, %s79
      %s109 = sphi 0, %s111
      %s112 = sphi 0, %s109
      %s113 = sphi 0, %s112
      %s129 = sphi 0, %s113
      %s133 = sphi 0, %s133
      %s135 = sphi 0, %s133
      %s136 = sphi 0, %s135
      %s150 = sphi 0, %s136
      %s154 = sphi 0, %s154
      %s156 = sphi 0, %s154
      %s157 = sphi 0, %s156
      %s171 = sphi 0, %s157
      %s175 = sphi 0, %s175
      %s177 = sphi 0, %s175
      %s178 = sphi 0, %s177
      %s192 = sphi 0, %s178
      %s196 = sphi 0, %s196
      %s198 = sphi 0, %s196
      %s199 = sphi 0, %s198
      %s213 = sphi 0, %s199
      %s217 = sphi 0, %s217
      %s219 = sphi 0, %s217
      %s220 = sphi 0, %s219
      %s234 = sphi 0, %s220
      %s242 = sphi 0, %s244
      %s245 = sphi 0, %s242
      %s246 = sphi 0, %s245
      %s262 = sphi 0, %s246
    $region4: #{tpu_custom_call.1} parent=1 // loop_header_branch
      %20 = sbr.rel (%p18) target = $region8
    $region5: #{tpu_custom_call.1} parent=1 // loop_body
      %s22 = ssub.s32 %s17, 1
      %s23 = ssub.s32 %s17, 2
      %s30 = sadd.s32 1, %s25
      %p31 = scmp.ge.s32.totalorder %s30, 1
      %s32 = scalar_select %p31, 0, %s30
      %s33 = sadd.s32 1, %s24
      %s34 = scalar_select %p31, %s33, %s24
      %p35 = scmp.ge.s32.totalorder %s34, 2
      %s36 = scalar_select %p35, 0, %s34
      %s37 = ssub.s32 %s24, %s36
      %s38 = ssub.s32 %s25, %s32
      %s39 = sor.u32 %s37, %s38
      %p40 = scmp.eq.s32.totalorder %s39, 0
      %s42 = sadd.s32 %s41, 1
      %s43 = scalar_select %p40, %s41, %s42
      %p46 = pneg %p40
      %p47 = scmp.eq.s32.totalorder %s17, 1
      %p48 = por %p46, %p47
      %p49 = scmp.ne.s32.totalorder %s41, %s44
      %p50 = scmp.eq.s32.totalorder %s17, 0
      %p51 = por %p49, %p50
      %p52 = scmp.ne.s32.totalorder %s41, %s44
      %p53 = scmp.eq.s32.totalorder %s22, 1
      %p54 = por %p52, %p53
      %p55 = scmp.ne.s32.totalorder %s44, %s45
      %p56 = scmp.eq.s32.totalorder %s22, 0
      %p57 = por %p55, %p56
      %p58 = scmp.ne.s32.totalorder %s44, %s45
      %p59 = scmp.eq.s32.totalorder %s23, 1
      %p60 = por %p58, %p59
      %p62 = scmp.ne.s32.totalorder %s45, %s61
      %p63 = scmp.eq.s32.totalorder %s23, 0
      %p64 = por %p62, %p63
      %s65 = ssub.s32 %s25, 1
      %p66 = scmp.gt.s32.totalorder %s65, 0
      %s67 = scalar_select %p66, %s65, 0
      %s68 = sadd.s32 %s24, %s67
      %s69 = ssub.s32 %s32, 1
      %p70 = scmp.gt.s32.totalorder %s69, 0
      %s71 = scalar_select %p70, %s69, 0
      %s72 = sadd.s32 %s36, %s71
      %s73 = ssub.s32 %s68, %s72
      %p74 = scmp.eq.s32.totalorder %s73, 0
      %s76 = sadd.s32 %s75, 1
      %s77 = scalar_select %p74, %s75, %s76
      %p80 = pneg %p74
      %p81 = scmp.eq.s32.totalorder %s17, 1
      %p82 = por %p80, %p81
      %p83 = scmp.ne.s32.totalorder %s75, %s78
      %p84 = scmp.eq.s32.totalorder %s17, 0
      %p85 = por %p83, %p84
      %p86 = scmp.ne.s32.totalorder %s75, %s78
      %p87 = scmp.eq.s32.totalorder %s22, 1
      %p88 = por %p86, %p87
      %p89 = scmp.ne.s32.totalorder %s78, %s79
      %p90 = scmp.eq.s32.totalorder %s22, 0
      %p91 = por %p89, %p90
      %p92 = scmp.ne.s32.totalorder %s78, %s79
      %p93 = scmp.eq.s32.totalorder %s23, 1
      %p94 = por %p92, %p93
      %p96 = scmp.ne.s32.totalorder %s79, %s95
      %p97 = scmp.eq.s32.totalorder %s23, 0
      %p98 = por %p96, %p97
      %s99 = sadd.s32 %s25, 1
      %p100 = scmp.lt.s32.totalorder %s99, 0
      %s101 = scalar_select %p100, %s99, 0
      %s102 = sadd.s32 %s24, %s101
      %s103 = sadd.s32 %s32, 1
      %p104 = scmp.lt.s32.totalorder %s103, 0
      %s105 = scalar_select %p104, %s103, 0
      %s106 = sadd.s32 %s36, %s105
      %s107 = ssub.s32 %s102, %s106
      %p108 = scmp.eq.s32.totalorder %s107, 0
      %s110 = sadd.s32 %s109, 1
      %s111 = scalar_select %p108, %s109, %s110
      %p114 = pneg %p108
      %p115 = scmp.eq.s32.totalorder %s17, 1
      %p116 = por %p114, %p115
      %p117 = scmp.ne.s32.totalorder %s109, %s112
      %p118 = scmp.eq.s32.totalorder %s17, 0
      %p119 = por %p117, %p118
      %p120 = scmp.ne.s32.totalorder %s109, %s112
      %p121 = scmp.eq.s32.totalorder %s22, 1
      %p122 = por %p120, %p121
      %p123 = scmp.ne.s32.totalorder %s112, %s113
      %p124 = scmp.eq.s32.totalorder %s22, 0
      %p125 = por %p123, %p124
      %p126 = scmp.ne.s32.totalorder %s112, %s113
      %p127 = scmp.eq.s32.totalorder %s23, 1
      %p128 = por %p126, %p127
      %p130 = scmp.ne.s32.totalorder %s113, %s129
      %p131 = scmp.eq.s32.totalorder %s23, 0
      %p132 = por %p130, %p131
      %s134 = sadd.s32 %s133, 1
      %p137 = scmp.eq.s32.totalorder %s17, 1
      %p138 = scmp.ne.s32.totalorder %s133, %s135
      %p139 = scmp.eq.s32.totalorder %s17, 0
      %p140 = por %p138, %p139
      %p141 = scmp.ne.s32.totalorder %s133, %s135
      %p142 = scmp.eq.s32.totalorder %s22, 1
      %p143 = por %p141, %p142
      %p144 = scmp.ne.s32.totalorder %s135, %s136
      %p145 = scmp.eq.s32.totalorder %s22, 0
      %p146 = por %p144, %p145
      %p147 = scmp.ne.s32.totalorder %s135, %s136
      %p148 = scmp.eq.s32.totalorder %s23, 1
      %p149 = por %p147, %p148
      %p151 = scmp.ne.s32.totalorder %s136, %s150
      %p152 = scmp.eq.s32.totalorder %s23, 0
      %p153 = por %p151, %p152
      %s155 = sadd.s32 %s154, 1
      %p158 = scmp.eq.s32.totalorder %s17, 1
      %p159 = scmp.ne.s32.totalorder %s154, %s156
      %p160 = scmp.eq.s32.totalorder %s17, 0
      %p161 = por %p159, %p160
      %p162 = scmp.ne.s32.totalorder %s154, %s156
      %p163 = scmp.eq.s32.totalorder %s22, 1
      %p164 = por %p162, %p163
      %p165 = scmp.ne.s32.totalorder %s156, %s157
      %p166 = scmp.eq.s32.totalorder %s22, 0
      %p167 = por %p165, %p166
      %p168 = scmp.ne.s32.totalorder %s156, %s157
      %p169 = scmp.eq.s32.totalorder %s23, 1
      %p170 = por %p168, %p169
      %p172 = scmp.ne.s32.totalorder %s157, %s171
      %p173 = scmp.eq.s32.totalorder %s23, 0
      %p174 = por %p172, %p173
      %s176 = sadd.s32 %s175, 1
      %p179 = scmp.eq.s32.totalorder %s17, 1
      %p180 = scmp.ne.s32.totalorder %s175, %s177
      %p181 = scmp.eq.s32.totalorder %s17, 0
      %p182 = por %p180, %p181
      %p183 = scmp.ne.s32.totalorder %s175, %s177
      %p184 = scmp.eq.s32.totalorder %s22, 1
      %p185 = por %p183, %p184
      %p186 = scmp.ne.s32.totalorder %s177, %s178
      %p187 = scmp.eq.s32.totalorder %s22, 0
      %p188 = por %p186, %p187
      %p189 = scmp.ne.s32.totalorder %s177, %s178
      %p190 = scmp.eq.s32.totalorder %s23, 1
      %p191 = por %p189, %p190
      %p193 = scmp.ne.s32.totalorder %s178, %s192
      %p194 = scmp.eq.s32.totalorder %s23, 0
      %p195 = por %p193, %p194
      %s197 = sadd.s32 %s196, 1
      %p200 = scmp.eq.s32.totalorder %s17, 1
      %p201 = scmp.ne.s32.totalorder %s196, %s198
      %p202 = scmp.eq.s32.totalorder %s17, 0
      %p203 = por %p201, %p202
      %p204 = scmp.ne.s32.totalorder %s196, %s198
      %p205 = scmp.eq.s32.totalorder %s22, 1
      %p206 = por %p204, %p205
      %p207 = scmp.ne.s32.totalorder %s198, %s199
      %p208 = scmp.eq.s32.totalorder %s22, 0
      %p209 = por %p207, %p208
      %p210 = scmp.ne.s32.totalorder %s198, %s199
      %p211 = scmp.eq.s32.totalorder %s23, 1
      %p212 = por %p210, %p211
      %p214 = scmp.ne.s32.totalorder %s199, %s213
      %p215 = scmp.eq.s32.totalorder %s23, 0
      %p216 = por %p214, %p215
      %s218 = sadd.s32 %s217, 1
      %p221 = scmp.eq.s32.totalorder %s17, 1
      %p222 = scmp.ne.s32.totalorder %s217, %s219
      %p223 = scmp.eq.s32.totalorder %s17, 0
      %p224 = por %p222, %p223
      %p225 = scmp.ne.s32.totalorder %s217, %s219
      %p226 = scmp.eq.s32.totalorder %s22, 1
      %p227 = por %p225, %p226
      %p228 = scmp.ne.s32.totalorder %s219, %s220
      %p229 = scmp.eq.s32.totalorder %s22, 0
      %p230 = por %p228, %p229
      %p231 = scmp.ne.s32.totalorder %s219, %s220
      %p232 = scmp.eq.s32.totalorder %s23, 1
      %p233 = por %p231, %p232
      %p235 = scmp.ne.s32.totalorder %s220, %s234
      %p236 = scmp.eq.s32.totalorder %s23, 0
      %p237 = por %p235, %p236
      %s238 = ssub.s32 %s24, %s36
      %s239 = ssub.s32 %s25, %s32
      %s240 = sor.u32 %s238, %s239
      %p241 = scmp.eq.s32.totalorder %s240, 0
      %s243 = sadd.s32 %s242, 1
      %s244 = scalar_select %p241, %s242, %s243
      %p247 = pneg %p241
      %p248 = scmp.eq.s32.totalorder %s17, 1
      %p249 = por %p247, %p248
      %p250 = scmp.ne.s32.totalorder %s242, %s245
      %p251 = scmp.eq.s32.totalorder %s17, 0
      %p252 = por %p250, %p251
      %p253 = scmp.ne.s32.totalorder %s242, %s245
      %p254 = scmp.eq.s32.totalorder %s22, 1
      %p255 = por %p253, %p254
      %p256 = scmp.ne.s32.totalorder %s245, %s246
      %p257 = scmp.eq.s32.totalorder %s22, 0
      %p258 = por %p256, %p257
      %p259 = scmp.ne.s32.totalorder %s245, %s246
      %p260 = scmp.eq.s32.totalorder %s23, 1
      %p261 = por %p259, %p260
      %p263 = scmp.ne.s32.totalorder %s246, %s262
      %p264 = scmp.eq.s32.totalorder %s23, 0
      %p265 = por %p263, %p264
      %p266 = scmp.le.s32.totalorder 1, %s17
      %p267 = scmp.lt.s32.totalorder %s17, 3
      %p268 = pnand %p266, %p267
      %p269 = pneg %p268
      // Predicated region
      $region9: #{tpu_custom_call.1} parent=5 // pred_check
        _
      $region10: #{tpu_custom_call.1} parent=5 // pred_check_branch
        %271 = sbr.rel (%p268) target = $region12
      $region11: #{tpu_custom_call.1} parent=5 // pred_region
        %s272 = ssub.s32 %s17, 1
        // Predicated region
        $region13: #{tpu_custom_call.1} parent=11 // pred_check
          %p273 = pneg %p146
        $region14: #{tpu_custom_call.1} parent=11 // pred_check_branch
          %275 = sbr.rel (%p273) target = $region16
        $region15: #{tpu_custom_call.1} parent=11 // pred_region
          _
        $region16: #{tpu_custom_call.1} parent=11 // pred_fallthru
          _
        // Predicated region
        $region17: #{tpu_custom_call.1} parent=11 // pred_check
          %p276 = pneg %p167
        $region18: #{tpu_custom_call.1} parent=11 // pred_check_branch
          %278 = sbr.rel (%p276) target = $region20
        $region19: #{tpu_custom_call.1} parent=11 // pred_region
          _
        $region20: #{tpu_custom_call.1} parent=11 // pred_fallthru
          _
        // Predicated region
        $region21: #{tpu_custom_call.1} parent=11 // pred_check
          %p279 = pneg %p188
        $region22: #{tpu_custom_call.1} parent=11 // pred_check_branch
          %281 = sbr.rel (%p279) target = $region24
        $region23: #{tpu_custom_call.1} parent=11 // pred_region
          _
        $region24: #{tpu_custom_call.1} parent=11 // pred_fallthru
          _
        // Predicated region
        $region25: #{tpu_custom_call.1} parent=11 // pred_check
          %p282 = pneg %p209
        $region26: #{tpu_custom_call.1} parent=11 // pred_check_branch
          %284 = sbr.rel (%p282) target = $region28
        $region27: #{tpu_custom_call.1} parent=11 // pred_region
          _
        $region28: #{tpu_custom_call.1} parent=11 // pred_fallthru
          _
        // Predicated region
        $region29: #{tpu_custom_call.1} parent=11 // pred_check
          %p285 = pneg %p230
        $region30: #{tpu_custom_call.1} parent=11 // pred_check_branch
          %287 = sbr.rel (%p285) target = $region32
        $region31: #{tpu_custom_call.1} parent=11 // pred_region
          _
        $region32: #{tpu_custom_call.1} parent=11 // pred_fallthru
          _
      $region12: #{tpu_custom_call.1} parent=5 // pred_fallthru
        _
      %p288 = scmp.lt.s32.totalorder %s17, 2
      // Predicated region
      $region33: #{tpu_custom_call.1} parent=5 // pred_check
        %p289 = pneg %p288
      $region34: #{tpu_custom_call.1} parent=5 // pred_check_branch
        %291 = sbr.rel (%p289) target = $region36
      $region35: #{tpu_custom_call.1} parent=5 // pred_region
        // Predicated region
        $region37: #{tpu_custom_call.1} parent=35 // pred_check
          %p292 = pneg %p51
        $region38: #{tpu_custom_call.1} parent=35 // pred_check_branch
          %294 = sbr.rel (%p292) target = $region40
        $region39: #{tpu_custom_call.1} parent=35 // pred_region
          %s295 = smul.u32 2, %s25
          %p296 = scmp.lt.s32.totalorder %s24, 1
          %s297 = scalar_select %p296, %s24, 1
          %p298 = scmp.lt.s32.totalorder %s295, 1
          %s299 = scalar_select %p298, %s295, 1
          %s300 = smul.addr %s297, 2
          %s301 = sadd.s32 %s299, %s300
          %s302 = smul.addr %s301, 4
          %s303 = scalar_lea.vmem %s0, %s302
          %s304 = smul.u32 2, %s25
        $region40: #{tpu_custom_call.1} parent=35 // pred_fallthru
          _
        // Predicated region
        $region41: #{tpu_custom_call.1} parent=35 // pred_check
          %p305 = pneg %p85
        $region42: #{tpu_custom_call.1} parent=35 // pred_check_branch
          %307 = sbr.rel (%p305) target = $region44
        $region43: #{tpu_custom_call.1} parent=35 // pred_region
          %s308 = ssub.s32 %s25, 1
          %p309 = scmp.gt.s32.totalorder %s308, 0
          %s310 = scalar_select %p309, %s308, 0
          %s311 = sadd.s32 %s24, %s310
          %p312 = scmp.lt.s32.totalorder %s311, 1
          %s313 = scalar_select %p312, %s311, 1
          %s314 = smul.addr %s313, 2
          %s315 = sadd.s32 1, %s314
          %s316 = smul.addr %s315, 4
          %s317 = scalar_lea.vmem %s1, %s316
          %s318 = ssub.s32 %s25, 1
          %p319 = scmp.gt.s32.totalorder %s318, 0
          %s320 = scalar_select %p319, %s318, 0
          %s321 = sadd.s32 %s24, %s320
        $region44: #{tpu_custom_call.1} parent=35 // pred_fallthru
          _
        // Predicated region
        $region45: #{tpu_custom_call.1} parent=35 // pred_check
          %p322 = pneg %p119
        $region46: #{tpu_custom_call.1} parent=35 // pred_check_branch
          %324 = sbr.rel (%p322) target = $region48
        $region47: #{tpu_custom_call.1} parent=35 // pred_region
          %s325 = sadd.s32 %s25, 1
          %p326 = scmp.lt.s32.totalorder %s325, 0
          %s327 = scalar_select %p326, %s325, 0
          %s328 = sadd.s32 %s24, %s327
          %p329 = scmp.lt.s32.totalorder %s328, 1
          %s330 = scalar_select %p329, %s328, 1
          %s331 = smul.addr %s330, 2
          %s332 = smul.addr %s331, 4
          %s333 = scalar_lea.vmem %s2, %s332
          %s334 = sadd.s32 %s25, 1
          %p335 = scmp.lt.s32.totalorder %s334, 0
          %s336 = scalar_select %p335, %s334, 0
          %s337 = sadd.s32 %s24, %s336
        $region48: #{tpu_custom_call.1} parent=35 // pred_fallthru
          _
      $region36: #{tpu_custom_call.1} parent=5 // pred_fallthru
        _
      %p338 = scmp.le.s32.totalorder 1, %s17
      %p339 = scmp.lt.s32.totalorder %s17, 3
      %p340 = pnand %p338, %p339
      %p341 = pneg %p340
      // Predicated region
      $region49: #{tpu_custom_call.1} parent=5 // pred_check
        _
      $region50: #{tpu_custom_call.1} parent=5 // pred_check_branch
        %343 = sbr.rel (%p340) target = $region52
      $region51: #{tpu_custom_call.1} parent=5 // pred_region
        %s344 = ssub.s32 %s17, 1
        %s345 = smul.u32 2, %s27
        %p346 = scmp.lt.s32.totalorder %s26, 1
        %s347 = scalar_select %p346, %s26, 1
        %p348 = scmp.lt.s32.totalorder %s345, 1
        %s349 = scalar_select %p348, %s345, 1
        %s350 = smul.addr %s347, 2
        %s351 = sadd.s32 %s349, %s350
        %s352 = smul.addr %s351, 4
        %s353 = scalar_lea.vmem %s0, %s352
        %p354 = pneg %p57
        %p355 = pneg %p54
        %s356 = ssub.s32 %s27, 1
        %p357 = scmp.gt.s32.totalorder %s356, 0
        %s358 = scalar_select %p357, %s356, 0
        %s359 = sadd.s32 %s26, %s358
        %p360 = scmp.lt.s32.totalorder %s359, 1
        %s361 = scalar_select %p360, %s359, 1
        %s362 = smul.addr %s361, 2
        %s363 = sadd.s32 1, %s362
        %s364 = smul.addr %s363, 4
        %s365 = scalar_lea.vmem %s1, %s364
        %p366 = pneg %p91
        %p367 = pneg %p88
        %s368 = sadd.s32 %s27, 1
        %p369 = scmp.lt.s32.totalorder %s368, 0
        %s370 = scalar_select %p369, %s368, 0
        %s371 = sadd.s32 %s26, %s370
        %p372 = scmp.lt.s32.totalorder %s371, 1
        %s373 = scalar_select %p372, %s371, 1
        %s374 = smul.addr %s373, 2
        %s375 = smul.addr %s374, 4
        %s376 = scalar_lea.vmem %s2, %s375
        %p377 = pneg %p125
        %p378 = pneg %p122
        %p379 = pneg %p146
        %p380 = pneg %p143
        %p381 = pneg %p167
        %p382 = pneg %p164
        %p383 = pneg %p188
        %p384 = pneg %p185
        %p385 = pneg %p209
        %p386 = pneg %p206
        %p387 = pneg %p230
        %p388 = pneg %p227
        %p389 = pneg %p258
        %p390 = pneg %p255
        %s391 = sand.u32 %s245, 1
        %s392 = scalar_lea.sflag [#allocation4], %s391
        %s393 = sand.u32 %s245, 1
        %s394 = smul.addr %s393, 16
        %s395 = scalar_lea.vmem [#allocation3], %s394
        %s396 = smul.u32 2, %s27
        %p397 = scmp.lt.s32.totalorder %s26, 1
        %s398 = scalar_select %p397, %s26, 1
        %p399 = scmp.lt.s32.totalorder %s396, 1
        %s400 = scalar_select %p399, %s396, 1
        %s401 = smul.addr %s398, 2
        %s402 = sadd.s32 %s400, %s401
        %s403 = smul.addr %s402, 4
        %s404 = scalar_lea.vmem %s0, %s403
        %s405 = smul.u32 2, %s27
        %s406 = ssub.s32 %s27, 1
        %p407 = scmp.gt.s32.totalorder %s406, 0
        %s408 = scalar_select %p407, %s406, 0
        %s409 = sadd.s32 %s26, %s408
        %p410 = scmp.lt.s32.totalorder %s409, 1
        %s411 = scalar_select %p410, %s409, 1
        %s412 = smul.addr %s411, 2
        %s413 = sadd.s32 1, %s412
        %s414 = smul.addr %s413, 4
        %s415 = scalar_lea.vmem %s1, %s414
        %s416 = ssub.s32 %s27, 1
        %p417 = scmp.gt.s32.totalorder %s416, 0
        %s418 = scalar_select %p417, %s416, 0
        %s419 = sadd.s32 %s26, %s418
        %s420 = sadd.s32 %s27, 1
        %p421 = scmp.lt.s32.totalorder %s420, 0
        %s422 = scalar_select %p421, %s420, 0
        %s423 = sadd.s32 %s26, %s422
        %p424 = scmp.lt.s32.totalorder %s423, 1
        %s425 = scalar_select %p424, %s423, 1
        %s426 = smul.addr %s425, 2
        %s427 = smul.addr %s426, 4
        %s428 = scalar_lea.vmem %s2, %s427
        %s429 = sadd.s32 %s27, 1
        %p430 = scmp.lt.s32.totalorder %s429, 0
        %s431 = scalar_select %p430, %s429, 0
        %s432 = sadd.s32 %s26, %s431
        %s433 = smul.u32 2, %s27
        %v434 = vld [vmem:[%s404] sm:$0xff]
        %v435 = vld [vmem:[%s415] sm:$0xf]
        %p436 = scmp.gt.s32.totalorder %s27, 0
        %s437 = scalar_select %p436, 1, 0
        %s438 = scvt.s32.f32 %s437
        %v439 = vstv %s438
        %v440 = vmul.f32 %v435, %v439
        %v441 = vld [vmem:[%s428] sm:$0xf]
        %p442 = scmp.lt.s32.totalorder %s27, 0
        %s443 = scalar_select %p442, 1, 0
        %s444 = scvt.s32.f32 %s443
        %v445 = vstv %s444
        %v446 = vmul.f32 %v441, %v445
        %v448 = vcombine.high %v434, %v434
        %449 = vrot.lane.b32.xlu0 %v434, 16
        %v450 = vpop.permute.xlu0 %449
        %451 = vrot.lane.b32.xlu0 %v448, 16
        %v452 = vpop.permute.xlu0 %451
        %vm453 = vcmask 130048
        %v454 = vsel %vm453, %v450, %v452
        %v457 = vsel %vm453, %v440, %v450
        %458 = vrot.lane.b32.xlu0 %v434, 112
        %v459 = vpop.permute.xlu0 %458
        %460 = vrot.lane.b32.xlu0 %v448, 112
        %v461 = vpop.permute.xlu0 %460
        %vm462 = vcmask 916480
        %v463 = vsel %vm462, %v459, %v461
        %467 = vrot.lane.b32.xlu0 %v446, 112
        %v468 = vpop.permute.xlu0 %467
        %v470 = vsel %vm462, %v461, %v468
        %v471 = vlaneseq
        %v472 = vand.u32 %v471, 127
        %v473 = vadd.s32 %v472, 128
        %vm474 = vcmp.lt.s32.totalorder %v472, 0
        %v475 = vsub.s32 0, %v472
        %v476 = vsel %vm474, %v475, %v472
        %v477 = vshrl.u32 %v476, 4
        %v478 = vand.u32 %v476, 15
        %v479 = vsub.s32 0, %v478
        %v480 = vsel %vm474, %v479, %v478
        %vm481 = vcmp.lt.s32.totalorder %v473, 0
        %v482 = vsub.s32 0, %v473
        %v483 = vsel %vm481, %v482, %v473
        %v484 = vshrl.u32 %v483, 4
        %v485 = vand.u32 %v483, 15
        %v486 = vsub.s32 0, %v485
        %v487 = vsel %vm481, %v486, %v485
        %vm488 = vcmp.ne.s32.totalorder %v480, 0
        %vm489 = vcmp.ne.s32.totalorder %v487, 0
        %vm490 = vcmp.lt.s32.totalorder %v480, 0
        %vm491 = vcmp.lt.s32.totalorder %v487, 0
        %vm492 = vmand %vm490, %vm488
        %vm493 = vmand %vm491, %vm489
        %v494 = vadd.s32 %v480, 16
        %v495 = vadd.s32 %v487, 16
        %v496 = vsel %vm492, %v494, %v480
        %v497 = vsel %vm493, %v495, %v487
        %vm498 = vcmp.ne.s32.totalorder %v496, 0
        %vm499 = vcmp.ne.s32.totalorder %v497, 0
        %vm500 = vcmp.ne.s32.totalorder %v496, 15
        %vm501 = vcmp.ne.s32.totalorder %v497, 15
        %503 = vrot.lane.b32.xlu0 %v457, 1
        %v504 = vpop.permute.xlu0 %503
        %505 = vrot.lane.b32.xlu0 %v454, 1
        %v506 = vpop.permute.xlu0 %505
        %vm507 = vcmask 7168
        %v508 = vsel %vm507, %v504, %v506
        %v511 = vsel %vm507, %v457, %v504
        %v512 = vsel %vm498, 1, 0
        %v513 = vsel %vm499, 1, 0
        %vm514 = vcmp.eq.s32.totalorder %v512, 1
        %vm515 = vcmp.eq.s32.totalorder %v513, 1
        %v516 = vsel %vm514, %v511, 0.0
        %v517 = vsel %vm515, %v508, 0.0
        %518 = vst [vmem:[#allocation2] sm:$0xf] %v516
        %519 = vst [vmem:[#allocation2 + $0x8] sm:$0xf] %v517
        %v520 = vrot.slane %v457, 4
        %v521 = vrot.slane %v454, 4
        %524 = vst [vmem:[#allocation2] sm:$0xf0] %v520
        %525 = vst [vmem:[#allocation2 + $0x8] sm:$0xf0] %v521
        %526 = vrot.lane.b32.xlu0 %v457, 127
        %v527 = vpop.permute.xlu0 %526
        %528 = vrot.lane.b32.xlu0 %v454, 127
        %v529 = vpop.permute.xlu0 %528
        %vm530 = vcmask 1039360
        %v531 = vsel %vm530, %v527, %v529
        %v534 = vsel %vm530, %v529, %v454
        %v535 = vsel %vm500, 1, 0
        %v536 = vsel %vm501, 1, 0
        %vm537 = vcmp.eq.s32.totalorder %v535, 1
        %vm538 = vcmp.eq.s32.totalorder %v536, 1
        %v539 = vsel %vm537, %v531, 0.0
        %v540 = vsel %vm538, %v534, 0.0
        %541 = vst [vmem:[#allocation2 + $0x10] sm:$0xf] %v539
        %542 = vst [vmem:[#allocation2 + $0x18] sm:$0xf] %v540
        %543 = vrot.lane.b32.xlu0 %v434, 1
        %v544 = vpop.permute.xlu0 %543
        %545 = vrot.lane.b32.xlu0 %v448, 1
        %v546 = vpop.permute.xlu0 %545
        %v547 = vsel %vm507, %v544, %v546
        %v550 = vsel %vm507, %v434, %v544
        %v551 = vsel %vm514, %v550, 0.0
        %v552 = vsel %vm515, %v547, 0.0
        %v555 = vrot.slane %v551, 4
        %v556 = vrot.slane %v552, 4
        %559 = vst [vmem:[#allocation2 + $0x10] sm:$0xf0] %v555
        %560 = vst [vmem:[#allocation2 + $0x18] sm:$0xf0] %v556
        %562 = vst [vmem:[#allocation2 + $0x20] sm:$0xf] %v434
        %563 = vst [vmem:[#allocation2 + $0x28] sm:$0xf] %v448
        %564 = vrot.lane.b32.xlu0 %v434, 127
        %v565 = vpop.permute.xlu0 %564
        %566 = vrot.lane.b32.xlu0 %v448, 127
        %v567 = vpop.permute.xlu0 %566
        %v568 = vsel %vm530, %v565, %v567
        %v571 = vsel %vm530, %v567, %v448
        %v572 = vsel %vm537, %v568, 0.0
        %v573 = vsel %vm538, %v571, 0.0
        %v576 = vrot.slane %v572, 4
        %v577 = vrot.slane %v573, 4
        %580 = vst [vmem:[#allocation2 + $0x20] sm:$0xf0] %v576
        %581 = vst [vmem:[#allocation2 + $0x28] sm:$0xf0] %v577
        %583 = vrot.lane.b32.xlu0 %v463, 1
        %v584 = vpop.permute.xlu0 %583
        %585 = vrot.lane.b32.xlu0 %v470, 1
        %v586 = vpop.permute.xlu0 %585
        %v587 = vsel %vm507, %v584, %v586
        %v590 = vsel %vm507, %v463, %v584
        %v591 = vsel %vm514, %v590, 0.0
        %v592 = vsel %vm515, %v587, 0.0
        %593 = vst [vmem:[#allocation2 + $0x30] sm:$0xf] %v591
        %594 = vst [vmem:[#allocation2 + $0x38] sm:$0xf] %v592
        %v595 = vrot.slane %v463, 4
        %v596 = vrot.slane %v470, 4
        %599 = vst [vmem:[#allocation2 + $0x30] sm:$0xf0] %v595
        %600 = vst [vmem:[#allocation2 + $0x38] sm:$0xf0] %v596
        %601 = vrot.lane.b32.xlu0 %v463, 127
        %v602 = vpop.permute.xlu0 %601
        %603 = vrot.lane.b32.xlu0 %v470, 127
        %v604 = vpop.permute.xlu0 %603
        %v605 = vsel %vm530, %v602, %v604
        %v608 = vsel %vm530, %v604, %v470
        %v609 = vsel %vm537, %v605, 0.0
        %v610 = vsel %vm538, %v608, 0.0
        %611 = vst [vmem:[#allocation2 + $0x40] sm:$0xf] %v609
        %612 = vst [vmem:[#allocation2 + $0x48] sm:$0xf] %v610
        %v613 = vld [vmem:[%s3] sm:$0xff]
        %v614 = vld [vmem:[%s3 + $0x8] sm:$0xff]
        %v615 = vld [vmem:[%s3 + $0x10] sm:$0xff]
        %v616 = vld [vmem:[%s3 + $0x18] sm:$0xff]
        %v617 = vld [vmem:[#allocation2] sm:$0xff]
        %v618 = vld [vmem:[#allocation2 + $0x8] sm:$0xff]
        %v619 = vld [vmem:[#allocation2 + $0x10] sm:$0xff]
        %v620 = vld [vmem:[#allocation2 + $0x18] sm:$0xff]
        %v621 = vld [vmem:[#allocation2 + $0x20] sm:$0xff]
        %v622 = vld [vmem:[#allocation2 + $0x28] sm:$0xff]
        %v623 = vld [vmem:[#allocation2 + $0x30] sm:$0xff]
        %v624 = vld [vmem:[#allocation2 + $0x38] sm:$0xff]
        %v625 = vld [vmem:[#allocation2 + $0x40] sm:$0xf]
        %v626 = vld [vmem:[#allocation2 + $0x48] sm:$0xf]
        %vm627 = vcmask 293888
        %v629 = vsel %vm627, %v613, 0
        %v632 = vsel %vm627, %v614, 0
        %v635 = vsel %vm627, %v615, 0
        %v638 = vsel %vm627, %v616, 0
        %vm640 = vcmask 1043456
        %v642 = vsel %vm640, %v625, 0
        %v645 = vsel %vm640, %v626, 0
        %647 = vmatprep.subr.mxu0 %v618
        %648 = vmatpush1.msra.mxu0 %v617
        %649 = vmatprep.subr.mxu0 %v620
        %650 = vmatpush1.msra.mxu0 %v619
        %651 = vmatprep.subr.mxu0 %v622
        %652 = vmatpush1.msra.mxu0 %v621
        %653 = vmatprep.subr.mxu0 %v624
        %654 = vmatpush1.msra.mxu0 %v623
        %655 = vmatprep.subr.mxu0 %v645
        %656 = vmatpush1.msra.mxu0 %v642
        %657 = vmatprep.subr.mxu0 0.0
        %658 = vmatpush1.msra.mxu0 0.0
        %659 = vmatprep.subr.mxu0 0.0
        %660 = vmatpush1.msra.mxu0 0.0
        %661 = vmatprep.subr.mxu0 0.0
        %662 = vmatpush1.msra.mxu0 0.0
        %663 = vmatprep.subr.mxu0 0.0
        %664 = vmatpush1.msra.mxu0 0.0
        %665 = vmatprep.subr.mxu0 0.0
        %666 = vmatpush1.msra.mxu0 0.0
        %667 = vmatprep.subr.mxu0 0.0
        %668 = vmatpush1.msra.mxu0 0.0
        %669 = vmatprep.subr.mxu0 0.0
        %670 = vmatpush1.msra.mxu0 0.0
        %671 = vmatprep.subr.mxu0 0.0
        %672 = vmatpush1.msra.mxu0 0.0
        %673 = vmatprep.subr.mxu0 0.0
        %674 = vmatpush1.msra.mxu0 0.0
        %675 = vmatprep.subr.mxu0 0.0
        %676 = vmatpush1.msra.mxu0 0.0
        %677 = vmatprep.subr.mxu0 0.0
        %678 = vmatpush1.msra.mxu0 0.0
        %679 = vmatprep.subr.mxu0 0.0
        %680 = vmatpush1.msra.mxu0 0.0
        %681 = vmatprep.subr.mxu0 0.0
        %682 = vmatpush1.msra.mxu0 0.0
        %683 = vmatprep.subr.mxu0 0.0
        %684 = vmatpush1.msra.mxu0 0.0
        %685 = vmatprep.subr.mxu0 0.0
        %686 = vmatpush1.msra.mxu0 0.0
        %687 = vmatprep.subr.mxu0 0.0
        %688 = vmatpush1.msra.mxu0 0.0
        %689 = vmatprep.subr.mxu0 0.0
        %690 = vmatpush1.msra.mxu0 0.0
        %691 = vmatprep.subr.mxu0 0.0
        %692 = vmatpush1.msra.mxu0 0.0
        %693 = vmatprep.subr.mxu0 0.0
        %694 = vmatpush1.msra.mxu0 0.0
        %695 = vmatprep.subr.mxu0 0.0
        %696 = vmatpush1.msra.mxu0 0.0
        %697 = vmatprep.subr.mxu0 0.0
        %698 = vmatpush1.msra.mxu0 0.0
        %699 = vmatprep.subr.mxu0 0.0
        %700 = vmatpush1.msra.mxu0 0.0
        %701 = vmatprep.subr.mxu0 0.0
        %702 = vmatpush1.msra.mxu0 0.0
        %703 = vmatprep.subr.mxu0 0.0
        %704 = vmatpush1.msra.mxu0 0.0
        %705 = vmatprep.subr.mxu0 0.0
        %706 = vmatpush1.msra.mxu0 0.0
        %707 = vmatprep.subr.mxu0 0.0
        %708 = vmatpush1.msra.mxu0 0.0
        %709 = vmatprep.subr.mxu0 0.0
        %710 = vmatpush1.msra.mxu0 0.0
        %711 = vmatprep.mubr.f32.mxu0 0.0
        %712 = vmatmul.mubr.f32.gmra.mrb[0].mxu0 %v629
        %v713 = vpop.f32.mrb[0].mxu0
        %v714 = vadd.f32 0.0, %v713
        %v715 = vpop.f32.mrb[0].mxu0
        %v716 = vadd.f32 0.0, %v715
        %717 = vmatprep.mubr.f32.mxu0 0.0
        %718 = vmatmul.mubr.f32.gmra.mrb[0].mxu0 %v632
        %v719 = vpop.f32.mrb[0].mxu0
        %v720 = vadd.f32 0.0, %v719
        %v721 = vpop.f32.mrb[0].mxu0
        %v722 = vadd.f32 0.0, %v721
        %723 = vmatprep.mubr.f32.mxu0 0.0
        %724 = vmatmul.mubr.f32.gmra.mrb[0].mxu0 %v635
        %v725 = vpop.f32.mrb[0].mxu0
        %v726 = vadd.f32 0.0, %v725
        %v727 = vpop.f32.mrb[0].mxu0
        %v728 = vadd.f32 0.0, %v727
        %729 = vmatprep.mubr.f32.mxu0 0.0
        %730 = vmatmul.mubr.f32.gmra.mrb[0].mxu0 %v638
        %v731 = vpop.f32.mrb[0].mxu0
        %v732 = vadd.f32 0.0, %v731
        %v733 = vpop.f32.mrb[0].mxu0
        %v734 = vadd.f32 0.0, %v733
        %735 = vdwg.mxu0
        %v736 = vld [vmem:[%s4] sm:$0xff]
        %v737 = vld [vmem:[%s4 + $0x8] sm:$0xff]
        %v738 = vld [vmem:[%s4 + $0x10] sm:$0xff]
        %v739 = vld [vmem:[%s4 + $0x18] sm:$0xff]
        %741 = vset.pattern.permute.xlu0 0
        %742 = vperm.xlu0 %741, %v736
        %v743 = vpop.permute.xlu0 %742
        %746 = vset.pattern.permute.xlu0 0
        %747 = vperm.xlu0 %746, %v737
        %v748 = vpop.permute.xlu0 %747
        %751 = vset.pattern.permute.xlu0 0
        %752 = vperm.xlu0 %751, %v738
        %v753 = vpop.permute.xlu0 %752
        %756 = vset.pattern.permute.xlu0 0
        %757 = vperm.xlu0 %756, %v739
        %v758 = vpop.permute.xlu0 %757
        %v760 = vmul.f32 %v714, %v743
        %v761 = vmul.f32 %v716, %v743
        %v762 = vmul.f32 %v720, %v748
        %v763 = vmul.f32 %v722, %v748
        %v764 = vmul.f32 %v726, %v753
        %v765 = vmul.f32 %v728, %v753
        %v766 = vmul.f32 %v732, %v758
        %v767 = vmul.f32 %v734, %v758
        %v768 = vld [vmem:[%s5] sm:$0xff]
        %v769 = vld [vmem:[%s5 + $0x8] sm:$0xff]
        %v770 = vld [vmem:[%s5 + $0x10] sm:$0xff]
        %v771 = vld [vmem:[%s5 + $0x18] sm:$0xff]
        %773 = vset.pattern.permute.xlu0 0
        %774 = vperm.xlu0 %773, %v768
        %v775 = vpop.permute.xlu0 %774
        %778 = vset.pattern.permute.xlu0 0
        %779 = vperm.xlu0 %778, %v769
        %v780 = vpop.permute.xlu0 %779
        %783 = vset.pattern.permute.xlu0 0
        %784 = vperm.xlu0 %783, %v770
        %v785 = vpop.permute.xlu0 %784
        %788 = vset.pattern.permute.xlu0 0
        %789 = vperm.xlu0 %788, %v771
        %v790 = vpop.permute.xlu0 %789
        %v792 = vadd.f32 %v760, %v775
        %v793 = vadd.f32 %v761, %v775
        %v794 = vadd.f32 %v762, %v780
        %v795 = vadd.f32 %v763, %v780
        %v796 = vadd.f32 %v764, %v785
        %v797 = vadd.f32 %v765, %v785
        %v798 = vadd.f32 %v766, %v790
        %v799 = vadd.f32 %v767, %v790
        %v800 = vmax.f32 %v792, 0.0
        %v801 = vmax.f32 %v793, 0.0
        %v802 = vmax.f32 %v794, 0.0
        %v803 = vmax.f32 %v795, 0.0
        %v804 = vmax.f32 %v796, 0.0
        %v805 = vmax.f32 %v797, 0.0
        %v806 = vmax.f32 %v798, 0.0
        %v807 = vmax.f32 %v799, 0.0
        %v808 = vld [vmem:[%s6] sm:$0xff]
        %v809 = vld [vmem:[%s7] sm:$0xff]
        %811 = vset.pattern.permute.xlu0 0
        %812 = vperm.xlu0 %811, %v809
        %v813 = vpop.permute.xlu0 %812
        %vm815 = vcmask 261120
        %v817 = vsel %vm815, %v808, 0
        %819 = vmatprep.subr.mxu0 %v801
        %820 = vmatpush1.msra.mxu0 %v800
        %821 = vmatprep.subr.mxu0 %v803
        %822 = vmatpush1.msra.mxu0 %v802
        %823 = vmatprep.subr.mxu0 %v805
        %824 = vmatpush1.msra.mxu0 %v804
        %825 = vmatprep.subr.mxu0 %v807
        %826 = vmatpush1.msra.mxu0 %v806
        %827 = vmatprep.subr.mxu0 0.0
        %828 = vmatpush1.msra.mxu0 0.0
        %829 = vmatprep.subr.mxu0 0.0
        %830 = vmatpush1.msra.mxu0 0.0
        %831 = vmatprep.subr.mxu0 0.0
        %832 = vmatpush1.msra.mxu0 0.0
        %833 = vmatprep.subr.mxu0 0.0
        %834 = vmatpush1.msra.mxu0 0.0
        %835 = vmatprep.subr.mxu0 0.0
        %836 = vmatpush1.msra.mxu0 0.0
        %837 = vmatprep.subr.mxu0 0.0
        %838 = vmatpush1.msra.mxu0 0.0
        %839 = vmatprep.subr.mxu0 0.0
        %840 = vmatpush1.msra.mxu0 0.0
        %841 = vmatprep.subr.mxu0 0.0
        %842 = vmatpush1.msra.mxu0 0.0
        %843 = vmatprep.subr.mxu0 0.0
        %844 = vmatpush1.msra.mxu0 0.0
        %845 = vmatprep.subr.mxu0 0.0
        %846 = vmatpush1.msra.mxu0 0.0
        %847 = vmatprep.subr.mxu0 0.0
        %848 = vmatpush1.msra.mxu0 0.0
        %849 = vmatprep.subr.mxu0 0.0
        %850 = vmatpush1.msra.mxu0 0.0
        %851 = vmatprep.subr.mxu0 0.0
        %852 = vmatpush1.msra.mxu0 0.0
        %853 = vmatprep.subr.mxu0 0.0
        %854 = vmatpush1.msra.mxu0 0.0
        %855 = vmatprep.subr.mxu0 0.0
        %856 = vmatpush1.msra.mxu0 0.0
        %857 = vmatprep.subr.mxu0 0.0
        %858 = vmatpush1.msra.mxu0 0.0
        %859 = vmatprep.subr.mxu0 0.0
        %860 = vmatpush1.msra.mxu0 0.0
        %861 = vmatprep.subr.mxu0 0.0
        %862 = vmatpush1.msra.mxu0 0.0
        %863 = vmatprep.subr.mxu0 0.0
        %864 = vmatpush1.msra.mxu0 0.0
        %865 = vmatprep.subr.mxu0 0.0
        %866 = vmatpush1.msra.mxu0 0.0
        %867 = vmatprep.subr.mxu0 0.0
        %868 = vmatpush1.msra.mxu0 0.0
        %869 = vmatprep.subr.mxu0 0.0
        %870 = vmatpush1.msra.mxu0 0.0
        %871 = vmatprep.subr.mxu0 0.0
        %872 = vmatpush1.msra.mxu0 0.0
        %873 = vmatprep.subr.mxu0 0.0
        %874 = vmatpush1.msra.mxu0 0.0
        %875 = vmatprep.subr.mxu0 0.0
        %876 = vmatpush1.msra.mxu0 0.0
        %877 = vmatprep.subr.mxu0 0.0
        %878 = vmatpush1.msra.mxu0 0.0
        %879 = vmatprep.subr.mxu0 0.0
        %880 = vmatpush1.msra.mxu0 0.0
        %881 = vmatprep.subr.mxu0 0.0
        %882 = vmatpush1.msra.mxu0 0.0
        %883 = vmatprep.mubr.f32.mxu0 0.0
        %884 = vmatmul.mubr.f32.gmra.mrb[0].mxu0 %v817
        %v885 = vpop.f32.mrb[0].mxu0
        %v886 = vadd.f32 %v813, %v885
        %v887 = vpop.f32.mrb[0].mxu0
        %v888 = vadd.f32 %v813, %v887
        %889 = vdwg.mxu0
        %890 = vst [vmem:[%s395] sm:$0xff] %v886
        %891 = vst [vmem:[%s395 + $0x8] sm:$0xff] %v888
        %s892 = sand.u32 %s245, 1
        %s893 = scalar_lea.sflag [#allocation4], %s892
        %s894 = sand.u32 %s245, 1
        %s895 = smul.addr %s894, 16
        %s896 = scalar_lea.vmem [#allocation3], %s895
        // Predicated region
        $region53: #{tpu_custom_call.1} parent=51 // pred_check
          %p897 = pneg %p255
        $region54: #{tpu_custom_call.1} parent=51 // pred_check_branch
          %899 = sbr.rel (%p897) target = $region56
        $region55: #{tpu_custom_call.1} parent=51 // pred_region
          %s900 = smul.u32 2, %s27
          %s902 = ssub.s32 256, 256
          %903 = vsyncadd %s893, %s902
          %s904 = smul.addr %s26, 2
          %s905 = sadd.s32 %s900, %s904
          %s906 = smul.addr %s905, 128
          %s907 = scalar_lea.hbm %s8, %s906
          %s909 = sshll.u32 %s896, 4
          %s910 = int_to_ptr.vmem [resolvable:$true] %s909
          %912 = dma.vmem_to_hbm [thread:$0]  %s910, 256, %s907, %s893
        $region56: #{tpu_custom_call.1} parent=51 // pred_fallthru
          _
      $region52: #{tpu_custom_call.1} parent=5 // pred_fallthru
        _
      %p913 = scmp.le.s32.totalorder 2, %s17
      // Predicated region
      $region57: #{tpu_custom_call.1} parent=5 // pred_check
        %p914 = pneg %p913
      $region58: #{tpu_custom_call.1} parent=5 // pred_check_branch
        %916 = sbr.rel (%p914) target = $region60
      $region59: #{tpu_custom_call.1} parent=5 // pred_region
        %s917 = ssub.s32 %s17, 2
        // Predicated region
        $region61: #{tpu_custom_call.1} parent=59 // pred_check
          %p918 = pneg %p261
        $region62: #{tpu_custom_call.1} parent=59 // pred_check_branch
          %920 = sbr.rel (%p918) target = $region64
        $region63: #{tpu_custom_call.1} parent=59 // pred_region
          %s921 = sand.u32 %s246, 1
          %s922 = scalar_lea.sflag [#allocation4], %s921
          %s923 = sand.u32 %s246, 1
          %s924 = smul.addr %s923, 16
          %s925 = scalar_lea.vmem [#allocation3], %s924
          %926 = dma.done %s922, 256
        $region64: #{tpu_custom_call.1} parent=59 // pred_fallthru
          _
      $region60: #{tpu_custom_call.1} parent=5 // pred_fallthru
        _
    $region6: #{tpu_custom_call.1} parent=1 // loop_footer
      %s21 = sadd.s32 1, %s17
    $region7: #{tpu_custom_call.1} parent=1 // loop_footer_branch
      %16 = sbr.rel target = $region3
    $region8: #{tpu_custom_call.1} parent=1 // loop_exit
      _
    %927 = vsyncpa [#allocation4], 1
    %s928 = scalar_lea.sflag [#allocation4], 1
    %929 = vsyncpa %s928, 1

</llo_original>
